<compile_context>
chip_gen: v7x
topology: tpu7x:2x2x1
jax: 0.10.0
libtpu: 0.0.40
codegen_flags: <defaults>
</compile_context>

<pallas_src>
import jax
import jax.numpy as jnp
from jax.experimental import pallas as pl
from jax.experimental.pallas import tpu as pltpu


def _round_up(n, m):
    return ((n + m - 1) // m) * m


def mlp_kernel(x_ref, w1_ref, b1_ref, w2_ref, b2_ref, o_ref):
    # Two MXU matmuls (bf16 in, f32 accumulate) + VPU bias/ReLU, all on one
    # VMEM-resident (TB, *) tile. Weights/biases are resident across the grid.
    h = jnp.dot(x_ref[...], w1_ref[...],
                preferred_element_type=jnp.float32)          # (TB, 64) f32
    h = jnp.maximum(h + b1_ref[...], 0.0)                    # bias + ReLU
    y = jnp.dot(h.astype(w2_ref.dtype), w2_ref[...],
                preferred_element_type=jnp.float32)          # (TB, 2) f32
    o_ref[...] = (y + b2_ref[...]).astype(o_ref.dtype)


def diabetes_forward(x, w1, b1, w2, b2, *, tb=4096):
    """Forward pass. x: (B, 8) f32; returns (B, 2) f32."""
    B = x.shape[0]

    # Effective batch tile: multiple of 8 (sublane granularity), capped at tb,
    # never larger than the (rounded-up) batch.
    tb_eff = min(_round_up(tb, 8), _round_up(B, 8))
    padded_B = _round_up(B, tb_eff)

    # bf16 activations/weights halve the dominant HBM read stream; biases and
    # accumulation stay in f32.
    x_bf = x.astype(jnp.bfloat16)
    if padded_B != B:
        x_bf = jnp.pad(x_bf, ((0, padded_B - B), (0, 0)))
    w1_bf = w1.astype(jnp.bfloat16)
    w2_bf = w2.astype(jnp.bfloat16)

    out = pl.pallas_call(
        mlp_kernel,
        out_shape=jax.ShapeDtypeStruct((padded_B, 2), jnp.float32),
        grid=(padded_B // tb_eff,),
        in_specs=[
            pl.BlockSpec((tb_eff, 8), lambda i: (i, 0)),   # x tile, streamed
            pl.BlockSpec((8, 64), lambda i: (0, 0)),       # w1, resident
            pl.BlockSpec((1, 64), lambda i: (0, 0)),       # b1, resident
            pl.BlockSpec((64, 2), lambda i: (0, 0)),       # w2, resident
            pl.BlockSpec((1, 2), lambda i: (0, 0)),        # b2, resident
        ],
        out_specs=pl.BlockSpec((tb_eff, 2), lambda i: (i, 0)),
        compiler_params=pltpu.CompilerParams(
            dimension_semantics=("parallel",)),
    )(x_bf, w1_bf, b1, w2_bf, b2)

    return out[:B]


def init_params(key):
    # Deterministic init mimicking nn.Linear's shapes:
    #   fc1: weight (64, 8), bias (64,)   -> stored transposed as (8, 64)
    #   fc2: weight (2, 64), bias (2,)    -> stored transposed as (64, 2)
    k1, k2, k3, k4 = jax.random.split(key, 4)
    bound1 = 1.0 / jnp.sqrt(8.0)
    bound2 = 1.0 / jnp.sqrt(64.0)
    w1 = jax.random.uniform(k1, (8, 64), jnp.float32, -bound1, bound1)
    b1 = jax.random.uniform(k2, (1, 64), jnp.float32, -bound1, bound1)
    w2 = jax.random.uniform(k3, (64, 2), jnp.float32, -bound2, bound2)
    b2 = jax.random.uniform(k4, (1, 2), jnp.float32, -bound2, bound2)
    return w1, b1, w2, b2


def _ref_bf16(x, w1, b1, w2, b2):
    # Reference matching the kernel's numerics (bf16 operands, f32 accumulate).
    f = lambda a: a.astype(jnp.bfloat16).astype(jnp.float32)
    h = jnp.maximum(f(x) @ f(w1) + b1, 0.0)
    return f(h) @ f(w2) + b2


if __name__ == "__main__":
    key = jax.random.PRNGKey(0)
    kx, kp = jax.random.split(key)
    w1, b1, w2, b2 = init_params(kp)

    # Small correctness check (single tile path).
    batch = 8
    x = jax.random.normal(kx, (batch, 8), jnp.float32)
    out = jax.block_until_ready(diabetes_forward(x, w1, b1, w2, b2))
    assert out.shape == (batch, 2)
    ref = _ref_bf16(x, w1, b1, w2, b2)
    assert jnp.allclose(out, ref, atol=1e-3, rtol=1e-3)
    ref_f32 = jnp.maximum(x @ w1 + b1, 0.0) @ w2 + b2
    assert jnp.allclose(out, ref_f32, atol=5e-2, rtol=5e-2)

    # Multi-tile + padding path (B not a multiple of the tile): grid > 1.
    batch2 = 100
    x2 = jax.random.normal(jax.random.PRNGKey(1), (batch2, 8), jnp.float32)
    out2 = jax.block_until_ready(
        diabetes_forward(x2, w1, b1, w2, b2, tb=32))
    assert out2.shape == (batch2, 2)
    ref2 = _ref_bf16(x2, w1, b1, w2, b2)
    assert jnp.allclose(out2, ref2, atol=1e-3, rtol=1e-3)

    print("KERNEL_OK")
</pallas_src>

<mosaic_0001>
module attributes {stable_mosaic.version = 11 : i64} {
  func.func @mlp_kernel(%arg0: i32, %arg1: memref<8x8xbf16, #tpu.memory_space<vmem>>, %arg2: memref<8x64xbf16, #tpu.memory_space<vmem>>, %arg3: memref<1x64xf32, #tpu.memory_space<vmem>>, %arg4: memref<64x2xbf16, #tpu.memory_space<vmem>>, %arg5: memref<1x2xf32, #tpu.memory_space<vmem>>, %arg6: memref<8x2xf32, #tpu.memory_space<vmem>>) attributes {dimension_semantics = [#tpu.dimension_semantics<parallel>], iteration_bounds = array<i64: 1>, scalar_prefetch = 0 : i64, scratch_operands = 0 : i64, tpu.core_type = #tpu.core_type<tc>, window_params = [{transform_indices = @transform_0, window_bounds = array<i64: 8, 8>}, {pipeline_mode = #tpu.pipeline_mode<synchronous>, transform_indices = @transform_1, window_bounds = array<i64: 8, 64>}, {pipeline_mode = #tpu.pipeline_mode<synchronous>, transform_indices = @transform_2, window_bounds = array<i64: 1, 64>}, {pipeline_mode = #tpu.pipeline_mode<synchronous>, transform_indices = @transform_3, window_bounds = array<i64: 64, 2>}, {pipeline_mode = #tpu.pipeline_mode<synchronous>, transform_indices = @transform_4, window_bounds = array<i64: 1, 2>}, {transform_indices = @transform_5, window_bounds = array<i64: 8, 2>}]} {
    %c0 = arith.constant 0 : index
    %c0_0 = arith.constant 0 : index
    %0 = vector.load %arg1[%c0, %c0_0] : memref<8x8xbf16, #tpu.memory_space<vmem>>, vector<8x8xbf16>
    %c0_1 = arith.constant 0 : index
    %c0_2 = arith.constant 0 : index
    %1 = vector.load %arg2[%c0_1, %c0_2] : memref<8x64xbf16, #tpu.memory_space<vmem>>, vector<8x64xbf16>
    %cst = arith.constant dense<0.000000e+00> : vector<8x64xf32>
    %2 = tpu.matmul %0, %1, %cst {dimension_numbers = #tpu.dot_dimension_numbers<[1], [0], [0], [1], [0, 0, 1, 1], [], []>} : vector<8x8xbf16>, vector<8x64xbf16>, vector<8x64xf32> -> vector<8x64xf32>
    %c0_3 = arith.constant 0 : index
    %c0_4 = arith.constant 0 : index
    %3 = vector.load %arg3[%c0_3, %c0_4] : memref<1x64xf32, #tpu.memory_space<vmem>>, vector<1x64xf32>
    %4 = vector.broadcast %3 : vector<1x64xf32> to vector<8x64xf32>
    %5 = arith.addf %2, %4 : vector<8x64xf32>
    %cst_5 = arith.constant 0.000000e+00 : f32
    %6 = vector.broadcast %cst_5 : f32 to vector<8x64xf32>
    %7 = arith.maximumf %5, %6 : vector<8x64xf32>
    %8 = arith.truncf %7 : vector<8x64xf32> to vector<8x64xbf16>
    %c0_6 = arith.constant 0 : index
    %c0_7 = arith.constant 0 : index
    %9 = vector.load %arg4[%c0_6, %c0_7] : memref<64x2xbf16, #tpu.memory_space<vmem>>, vector<64x2xbf16>
    %cst_8 = arith.constant dense<0.000000e+00> : vector<8x2xf32>
    %10 = tpu.matmul %8, %9, %cst_8 {dimension_numbers = #tpu.dot_dimension_numbers<[1], [0], [0], [1], [0, 0, 1, 1], [], []>} : vector<8x64xbf16>, vector<64x2xbf16>, vector<8x2xf32> -> vector<8x2xf32>
    %c0_9 = arith.constant 0 : index
    %c0_10 = arith.constant 0 : index
    %11 = vector.load %arg5[%c0_9, %c0_10] : memref<1x2xf32, #tpu.memory_space<vmem>>, vector<1x2xf32>
    %12 = vector.broadcast %11 : vector<1x2xf32> to vector<8x2xf32>
    %13 = arith.addf %10, %12 : vector<8x2xf32>
    %c0_11 = arith.constant 0 : index
    %c0_12 = arith.constant 0 : index
    %14 = vector.load %arg6[%c0_11, %c0_12] : memref<8x2xf32, #tpu.memory_space<vmem>>, vector<8x2xf32>
    tpu.vector_store %arg6[%c0_11, %c0_12], %13 {strides = array<i32>} : memref<8x2xf32, #tpu.memory_space<vmem>>, vector<8x2xf32>,
    return
  }
  func.func @transform_0(%arg0: i32) -> (i32, i32) {
    %c0_i32 = arith.constant 0 : i32
    %c0_i32_0 = arith.constant 0 : i32
    return %arg0, %c0_i32 : i32, i32
  }
  func.func @transform_1(%arg0: i32) -> (i32, i32) {
    %c0_i32 = arith.constant 0 : i32
    %c0_i32_0 = arith.constant 0 : i32
    %c0_i32_1 = arith.constant 0 : i32
    return %c0_i32, %c0_i32_0 : i32, i32
  }
  func.func @transform_2(%arg0: i32) -> (i32, i32) {
    %c0_i32 = arith.constant 0 : i32
    %c0_i32_0 = arith.constant 0 : i32
    %c0_i32_1 = arith.constant 0 : i32
    return %c0_i32, %c0_i32_0 : i32, i32
  }
  func.func @transform_3(%arg0: i32) -> (i32, i32) {
    %c0_i32 = arith.constant 0 : i32
    %c0_i32_0 = arith.constant 0 : i32
    %c0_i32_1 = arith.constant 0 : i32
    return %c0_i32, %c0_i32_0 : i32, i32
  }
  func.func @transform_4(%arg0: i32) -> (i32, i32) {
    %c0_i32 = arith.constant 0 : i32
    %c0_i32_0 = arith.constant 0 : i32
    %c0_i32_1 = arith.constant 0 : i32
    return %c0_i32, %c0_i32_0 : i32, i32
  }
  func.func @transform_5(%arg0: i32) -> (i32, i32) {
    %c0_i32 = arith.constant 0 : i32
    %c0_i32_0 = arith.constant 0 : i32
    return %arg0, %c0_i32 : i32, i32
  }
}

</mosaic_0001>

<llo_original>
// kernel: tpu_custom_call.1
$region0: #{tpu_custom_call.1}
  #allocation0 [shape = 'u32[]', space=smem, size = 0x4, offset = 0x4, fixed_abs, tag = 'smem constant byte address 0x4 - core index']
  #allocation1 [shape = 'u32[144,128]{1,0:T(1,128)}', space=vmem, size = 0x12000, scoped, tag = 'internal scratch']
  %s0 = inlined_call_operand.vmem [shape: bf16[8,8], index: 0, kind: input, shape index: {}]
  %s1 = inlined_call_operand.vmem [shape: bf16[8,64], index: 1, kind: input, shape index: {}]
  %s2 = inlined_call_operand.vmem [shape: f32[1,64], index: 2, kind: input, shape index: {}]
  %s3 = inlined_call_operand.vmem [shape: bf16[64,2], index: 3, kind: input, shape index: {}]
  %s4 = inlined_call_operand.vmem [shape: f32[1,2], index: 4, kind: input, shape index: {}]
  %s5 = inlined_call_operand.vmem [shape: f32[8,2], index: 5, kind: output, shape index: {}]
  %s6 = sld [smem:[#allocation0]]
  $region30: #{tpu_custom_call.1} parent=0
    _
  %s8 = ssub.s32 1, %s6
  %s9 = scalar_select 0, %s8, %s6
  // Predicated region
  $region2: #{tpu_custom_call.1} parent=0 // pred_check
    _
  $region3: #{tpu_custom_call.1} parent=0 // pred_check_branch
    %11 = sbr.rel (0) target = $region5
  $region4: #{tpu_custom_call.1} parent=0 // pred_region
    _
  $region5: #{tpu_custom_call.1} parent=0 // pred_fallthru
    _
  // Predicated region
  $region6: #{tpu_custom_call.1} parent=0 // pred_check
    _
  $region7: #{tpu_custom_call.1} parent=0 // pred_check_branch
    %13 = sbr.rel (0) target = $region9
  $region8: #{tpu_custom_call.1} parent=0 // pred_region
    _
  $region9: #{tpu_custom_call.1} parent=0 // pred_fallthru
    _
  // Predicated region
  $region10: #{tpu_custom_call.1} parent=0 // pred_check
    _
  $region11: #{tpu_custom_call.1} parent=0 // pred_check_branch
    %15 = sbr.rel (0) target = $region13
  $region12: #{tpu_custom_call.1} parent=0 // pred_region
    _
  $region13: #{tpu_custom_call.1} parent=0 // pred_fallthru
    _
  // Predicated region
  $region14: #{tpu_custom_call.1} parent=0 // pred_check
    _
  $region15: #{tpu_custom_call.1} parent=0 // pred_check_branch
    %17 = sbr.rel (0) target = $region17
  $region16: #{tpu_custom_call.1} parent=0 // pred_region
    _
  $region17: #{tpu_custom_call.1} parent=0 // pred_fallthru
    _
  // Predicated region
  $region18: #{tpu_custom_call.1} parent=0 // pred_check
    _
  $region19: #{tpu_custom_call.1} parent=0 // pred_check_branch
    %19 = sbr.rel (0) target = $region21
  $region20: #{tpu_custom_call.1} parent=0 // pred_region
    _
  $region21: #{tpu_custom_call.1} parent=0 // pred_fallthru
    _
  %v21 = vld [vmem:[%s0] sm:$0xf]
  %v22 = vld [vmem:[%s1] sm:$0xf]
  %v23 = vld [vmem:[%s2] sm:$0x1]
  %v25 = vlaneseq
  %v26 = vshrl.u32 %v25, 7
  %v27 = vsub.s32 0, %v26
  %v28 = vrot.slane %v23, %v27
  %vm30 = vcmask 64512
  %v32 = vsel %vm30, %v21, 0
  %vm34 = vcmask 1043456
  %v36 = vsel %vm34, %v22, 0
  %38 = vmatprep.subr.bf16.mxu0 0
  %39 = vmatpush1.bf16.msra.mxu0 %v36
  %40 = vmatprep.subr.bf16.mxu0 0
  %41 = vmatpush1.bf16.msra.mxu0 0
  %42 = vmatprep.subr.bf16.mxu0 0
  %43 = vmatpush1.bf16.msra.mxu0 0
  %44 = vmatprep.subr.bf16.mxu0 0
  %45 = vmatpush1.bf16.msra.mxu0 0
  %46 = vmatprep.subr.bf16.mxu0 0
  %47 = vmatpush1.bf16.msra.mxu0 0
  %48 = vmatprep.subr.bf16.mxu0 0
  %49 = vmatpush1.bf16.msra.mxu0 0
  %50 = vmatprep.subr.bf16.mxu0 0
  %51 = vmatpush1.bf16.msra.mxu0 0
  %52 = vmatprep.subr.bf16.mxu0 0
  %53 = vmatpush1.bf16.msra.mxu0 0
  %54 = vmatprep.subr.bf16.mxu0 0
  %55 = vmatpush1.bf16.msra.mxu0 0
  %56 = vmatprep.subr.bf16.mxu0 0
  %57 = vmatpush1.bf16.msra.mxu0 0
  %58 = vmatprep.subr.bf16.mxu0 0
  %59 = vmatpush1.bf16.msra.mxu0 0
  %60 = vmatprep.subr.bf16.mxu0 0
  %61 = vmatpush1.bf16.msra.mxu0 0
  %62 = vmatprep.subr.bf16.mxu0 0
  %63 = vmatpush1.bf16.msra.mxu0 0
  %64 = vmatprep.subr.bf16.mxu0 0
  %65 = vmatpush1.bf16.msra.mxu0 0
  %66 = vmatprep.subr.bf16.mxu0 0
  %67 = vmatpush1.bf16.msra.mxu0 0
  %68 = vmatprep.subr.bf16.mxu0 0
  %69 = vmatpush1.bf16.msra.mxu0 0
  %70 = vmatprep.mubr.bf16.mxu0 0
  %71 = vmatmul.mubr.bf16.gmra.mrb[0].mxu0 %v32
  %v72 = vpop.f32.mrb[0].mxu0
  %v73 = vadd.f32 %v28, %v72
  %v74 = vpop.f32.mrb[0].mxu0
  %v75 = vpop.f32.mrb[0].mxu0
  %v76 = vpop.f32.mrb[0].mxu0
  %77 = vdwg.mxu0
  %v78 = vmax.f32 %v73, 0.0
  %v79 = vpack.c.bf16 %v78, %v78
  %v80 = vld [vmem:[%s3] sm:$0xf]
  %v81 = vld [vmem:[%s3 + $0x4] sm:$0xf]
  %v82 = vld [vmem:[%s3 + $0x8] sm:$0xf]
  %v83 = vld [vmem:[%s3 + $0xc] sm:$0xf]
  %v84 = vld [vmem:[%s3 + $0x10] sm:$0xf]
  %v85 = vld [vmem:[%s3 + $0x14] sm:$0xf]
  %v86 = vld [vmem:[%s3 + $0x18] sm:$0xf]
  %v87 = vld [vmem:[%s3 + $0x1c] sm:$0xf]
  %v88 = vld [vmem:[%s4] sm:$0x1]
  %v90 = vlaneseq
  %v91 = vshrl.u32 %v90, 7
  %v92 = vsub.s32 0, %v91
  %v93 = vrot.slane %v88, %v92
  %v103 = vunpack.c.l.b16 %v80
  %v104 = vunpack.c.l.b16 %v81
  %v105 = vunpack.c.l.b16 %v82
  %v106 = vunpack.c.l.b16 %v83
  %v107 = vunpack.c.l.b16 %v84
  %v108 = vunpack.c.l.b16 %v85
  %v109 = vunpack.c.l.b16 %v86
  %v110 = vunpack.c.l.b16 %v87
  %v111 = vpack.c.b16 %v104, %v103
  %v112 = vpack.c.b16 %v106, %v105
  %v113 = vpack.c.b16 %v108, %v107
  %v114 = vpack.c.b16 %v110, %v109
  %vm119 = vcmask 523264
  %v121 = vsel %vm119, %v79, 0
  %123 = vmatprep.subr.bf16.mxu0 0
  %124 = vmatpush1.bf16.msra.mxu0 %v111
  %125 = vmatprep.subr.bf16.mxu0 0
  %126 = vmatpush1.bf16.msra.mxu0 %v112
  %127 = vmatprep.subr.bf16.mxu0 0
  %128 = vmatpush1.bf16.msra.mxu0 %v113
  %129 = vmatprep.subr.bf16.mxu0 0
  %130 = vmatpush1.bf16.msra.mxu0 %v114
  %131 = vmatprep.subr.bf16.mxu0 0
  %132 = vmatpush1.bf16.msra.mxu0 0
  %133 = vmatprep.subr.bf16.mxu0 0
  %134 = vmatpush1.bf16.msra.mxu0 0
  %135 = vmatprep.subr.bf16.mxu0 0
  %136 = vmatpush1.bf16.msra.mxu0 0
  %137 = vmatprep.subr.bf16.mxu0 0
  %138 = vmatpush1.bf16.msra.mxu0 0
  %139 = vmatprep.subr.bf16.mxu0 0
  %140 = vmatpush1.bf16.msra.mxu0 0
  %141 = vmatprep.subr.bf16.mxu0 0
  %142 = vmatpush1.bf16.msra.mxu0 0
  %143 = vmatprep.subr.bf16.mxu0 0
  %144 = vmatpush1.bf16.msra.mxu0 0
  %145 = vmatprep.subr.bf16.mxu0 0
  %146 = vmatpush1.bf16.msra.mxu0 0
  %147 = vmatprep.subr.bf16.mxu0 0
  %148 = vmatpush1.bf16.msra.mxu0 0
  %149 = vmatprep.subr.bf16.mxu0 0
  %150 = vmatpush1.bf16.msra.mxu0 0
  %151 = vmatprep.subr.bf16.mxu0 0
  %152 = vmatpush1.bf16.msra.mxu0 0
  %153 = vmatprep.subr.bf16.mxu0 0
  %154 = vmatpush1.bf16.msra.mxu0 0
  %155 = vmatprep.mubr.bf16.mxu0 0
  %156 = vmatmul.mubr.bf16.gmra.mrb[0].mxu0 %v121
  %v157 = vpop.f32.mrb[0].mxu0
  %v158 = vadd.f32 %v93, %v157
  %v159 = vpop.f32.mrb[0].mxu0
  %v160 = vpop.f32.mrb[0].mxu0
  %v161 = vpop.f32.mrb[0].mxu0
  %162 = vdwg.mxu0
  %vm163 = vcmask 15360
  %164 = vst.msk [vmem:[%s5] sm:$0xff] %vm163, %v158
  // Predicated region
  $region22: #{tpu_custom_call.1} parent=0 // pred_check
    _
  $region23: #{tpu_custom_call.1} parent=0 // pred_check_branch
    %166 = sbr.rel (0) target = $region25
  $region24: #{tpu_custom_call.1} parent=0 // pred_region
    _
  $region25: #{tpu_custom_call.1} parent=0 // pred_fallthru
    _
  // Predicated region
  $region26: #{tpu_custom_call.1} parent=0 // pred_check
    _
  $region27: #{tpu_custom_call.1} parent=0 // pred_check_branch
    %168 = sbr.rel (0) target = $region29
  $region28: #{tpu_custom_call.1} parent=0 // pred_region
    _
  $region29: #{tpu_custom_call.1} parent=0 // pred_fallthru
    _

</llo_original>
